<compile_context>
chip_gen: v7x
topology: tpu7x:2x2x1
jax: 0.10.0
libtpu: 0.0.40
codegen_flags: <defaults>
</compile_context>

<pallas_src>
import functools

import jax
import jax.numpy as jnp
from jax.experimental import pallas as pl
from jax.experimental.pallas import tpu as pltpu

_LANE = 128
_SUBLANE = 8


def policy_kernel(x_ref, w1_ref, b1_ref, w2_ref, b2_ref, out_ref):
    # fc1 + relu. Matmul inputs may be bf16; accumulate in f32 on the MXU.
    x = x_ref[...]
    h = jnp.dot(x, w1_ref[...], preferred_element_type=jnp.float32) + b1_ref[...]
    h = jnp.maximum(h, 0.0)  # f32 epilogue (v5e-safe)

    # fc2 (padded action axis; padded columns carry a -1e30 bias).
    logits = (
        jnp.dot(h.astype(w2_ref.dtype), w2_ref[...], preferred_element_type=jnp.float32)
        + b2_ref[...]
    )

    # Softmax over the (lane) action axis, fully in f32 with an exact divide
    # (approx reciprocal is not accurate enough for tight tolerances and the
    # action axis is tiny, so the divide cost is negligible).
    m = jnp.max(logits, axis=-1, keepdims=True)
    e = jnp.exp(logits - m)
    denom = jnp.sum(e, axis=-1, keepdims=True)
    out_ref[...] = (e / denom).astype(out_ref.dtype)


@functools.partial(jax.jit, static_argnames=("compute_dtype", "tile_m"))
def softmax_policy_forward(state, w1, b1, w2, b2, *, compute_dtype=jnp.float32, tile_m=512):
    """state: (B, S); w1: (S, H); b1: (1, H); w2: (H, A); b2: (1, A) -> (B, A).

    Weights are pre-transposed to (in_features, out_features), i.e. the kernel
    computes x @ W which equals PyTorch's x @ W.T.
    """
    B, S = state.shape
    H = w1.shape[1]
    A = w2.shape[1]

    # Lane-dense output: pad the action axis up to a multiple of 128.
    A_pad = ((A + _LANE - 1) // _LANE) * _LANE

    # Pad batch to a multiple of the sublane count, then pick the batch tile.
    B_pad = ((B + _SUBLANE - 1) // _SUBLANE) * _SUBLANE
    if B_pad > tile_m:
        tm = tile_m
        B_pad = ((B_pad + tm - 1) // tm) * tm
    else:
        tm = B_pad

    # Prepare (padded / cast) operands. Biases stay f32; padded action columns
    # get a large negative bias so they vanish under softmax.
    state_p = jnp.zeros((B_pad, S), compute_dtype).at[:B].set(state.astype(compute_dtype))
    w1_c = w1.astype(compute_dtype)
    b1_c = b1.astype(jnp.float32)
    w2_p = jnp.zeros((H, A_pad), compute_dtype).at[:, :A].set(w2.astype(compute_dtype))
    b2_p = jnp.full((1, A_pad), -1e30, jnp.float32).at[:, :A].set(b2.astype(jnp.float32))

    grid = (B_pad // tm,)

    itemsize = jnp.dtype(compute_dtype).itemsize
    cost = pl.CostEstimate(
        flops=2 * B_pad * (S * H + H * A_pad),
        transcendentals=B_pad * A_pad,  # exp
        bytes_accessed=(
            B_pad * S * itemsize          # state stream in
            + S * H * itemsize + H * 4    # fc1 weights/bias (resident)
            + H * A_pad * itemsize + A_pad * 4
            + B_pad * A_pad * 4           # probabilities out
        ),
    )

    out = pl.pallas_call(
        policy_kernel,
        out_shape=jax.ShapeDtypeStruct((B_pad, A_pad), jnp.float32),
        grid_spec=pltpu.PrefetchScalarGridSpec(
            num_scalar_prefetch=0,
            grid=grid,
            in_specs=[
                pl.BlockSpec((tm, S), lambda i: (i, 0)),       # state: streamed per tile
                pl.BlockSpec((S, H), lambda i: (0, 0)),        # w1: resident
                pl.BlockSpec((1, H), lambda i: (0, 0)),        # b1: resident
                pl.BlockSpec((H, A_pad), lambda i: (0, 0)),    # w2: resident
                pl.BlockSpec((1, A_pad), lambda i: (0, 0)),    # b2: resident
            ],
            out_specs=pl.BlockSpec((tm, A_pad), lambda i: (i, 0)),
        ),
        compiler_params=pltpu.CompilerParams(
            dimension_semantics=("parallel",),  # shard batch tiles across TCs on v7x
        ),
        cost_estimate=cost,
    )(state_p, w1_c, b1_c, w2_p, b2_p)

    return out[:B, :A]


def init_linear_params(key, in_features, out_features):
    """Deterministic init mimicking torch.nn.Linear (uniform +/- 1/sqrt(fan_in)).
    Returned weight is already transposed to (in_features, out_features)."""
    kw, kb = jax.random.split(key)
    bound = 1.0 / jnp.sqrt(jnp.float32(in_features))
    w = jax.random.uniform(kw, (in_features, out_features), jnp.float32, -bound, bound)
    b = jax.random.uniform(kb, (1, out_features), jnp.float32, -bound, bound)
    return w, b


if __name__ == "__main__":
    # Small shapes consistent with the module's forward.
    batch, state_size, hidden_size, action_size = 8, 16, 32, 8

    key = jax.random.PRNGKey(0)
    k_x, k_fc1, k_fc2 = jax.random.split(key, 3)

    state = jax.random.normal(k_x, (batch, state_size), jnp.float32)
    w1, b1 = init_linear_params(k_fc1, state_size, hidden_size)
    w2, b2 = init_linear_params(k_fc2, hidden_size, action_size)

    # Pure-JAX reference (HIGHEST precision so it matches full-f32 MXU passes).
    hp = jax.lax.Precision.HIGHEST
    h_ref = jnp.maximum(jnp.dot(state, w1, precision=hp) + b1, 0.0)
    ref = jax.nn.softmax(jnp.dot(h_ref, w2, precision=hp) + b2, axis=1)

    # f32 path (v5e-safe default).
    out = softmax_policy_forward(state, w1, b1, w2, b2, compute_dtype=jnp.float32)
    out = jax.block_until_ready(out)
    assert out.shape == (batch, action_size)
    assert jnp.allclose(out, ref, atol=1e-4, rtol=1e-4), (
        f"max abs err {jnp.max(jnp.abs(out - ref))}"
    )
    assert jnp.allclose(jnp.sum(out, axis=1), 1.0, atol=1e-5)

    # bf16 matmul path (memory-bound win on v6e/v7x); epilogue stays f32.
    out_bf16 = softmax_policy_forward(state, w1, b1, w2, b2, compute_dtype=jnp.bfloat16)
    out_bf16 = jax.block_until_ready(out_bf16)
    assert out_bf16.shape == (batch, action_size)
    assert jnp.allclose(out_bf16, ref, atol=5e-2, rtol=5e-2)
    assert jnp.allclose(jnp.sum(out_bf16, axis=1), 1.0, atol=1e-3)

    print("KERNEL_OK")
</pallas_src>

<mosaic_0001>
module attributes {stable_mosaic.version = 11 : i64} {
  func.func @policy_kernel(%arg0: i32, %arg1: memref<8x16xf32, #tpu.memory_space<vmem>>, %arg2: memref<16x32xf32, #tpu.memory_space<vmem>>, %arg3: memref<1x32xf32, #tpu.memory_space<vmem>>, %arg4: memref<32x128xf32, #tpu.memory_space<vmem>>, %arg5: memref<1x128xf32, #tpu.memory_space<vmem>>, %arg6: memref<8x128xf32, #tpu.memory_space<vmem>>) attributes {dimension_semantics = [#tpu.dimension_semantics<parallel>], iteration_bounds = array<i64: 1>, scalar_prefetch = 0 : i64, scratch_operands = 0 : i64, tpu.core_type = #tpu.core_type<tc>, window_params = [{transform_indices = @transform_0, window_bounds = array<i64: 8, 16>}, {pipeline_mode = #tpu.pipeline_mode<synchronous>, transform_indices = @transform_1, window_bounds = array<i64: 16, 32>}, {pipeline_mode = #tpu.pipeline_mode<synchronous>, transform_indices = @transform_2, window_bounds = array<i64: 1, 32>}, {pipeline_mode = #tpu.pipeline_mode<synchronous>, transform_indices = @transform_3, window_bounds = array<i64: 32, 128>}, {pipeline_mode = #tpu.pipeline_mode<synchronous>, transform_indices = @transform_4, window_bounds = array<i64: 1, 128>}, {transform_indices = @transform_5, window_bounds = array<i64: 8, 128>}]} {
    %c0 = arith.constant 0 : index
    %c0_0 = arith.constant 0 : index
    %0 = vector.load %arg1[%c0, %c0_0] : memref<8x16xf32, #tpu.memory_space<vmem>>, vector<8x16xf32>
    %c0_1 = arith.constant 0 : index
    %c0_2 = arith.constant 0 : index
    %1 = vector.load %arg2[%c0_1, %c0_2] : memref<16x32xf32, #tpu.memory_space<vmem>>, vector<16x32xf32>
    %cst = arith.constant dense<0.000000e+00> : vector<8x32xf32>
    %2 = tpu.matmul %0, %1, %cst {dimension_numbers = #tpu.dot_dimension_numbers<[1], [0], [0], [1], [0, 0, 1, 1], [], []>} : vector<8x16xf32>, vector<16x32xf32>, vector<8x32xf32> -> vector<8x32xf32>
    %c0_3 = arith.constant 0 : index
    %c0_4 = arith.constant 0 : index
    %3 = vector.load %arg3[%c0_3, %c0_4] : memref<1x32xf32, #tpu.memory_space<vmem>>, vector<1x32xf32>
    %4 = vector.broadcast %3 : vector<1x32xf32> to vector<8x32xf32>
    %5 = arith.addf %2, %4 : vector<8x32xf32>
    %cst_5 = arith.constant 0.000000e+00 : f32
    %6 = vector.broadcast %cst_5 : f32 to vector<8x32xf32>
    %7 = arith.maximumf %5, %6 : vector<8x32xf32>
    %c0_6 = arith.constant 0 : index
    %c0_7 = arith.constant 0 : index
    %8 = vector.load %arg4[%c0_6, %c0_7] : memref<32x128xf32, #tpu.memory_space<vmem>>, vector<32x128xf32>
    %cst_8 = arith.constant dense<0.000000e+00> : vector<8x128xf32>
    %9 = tpu.matmul %7, %8, %cst_8 {dimension_numbers = #tpu.dot_dimension_numbers<[1], [0], [0], [1], [0, 0, 1, 1], [], []>} : vector<8x32xf32>, vector<32x128xf32>, vector<8x128xf32> -> vector<8x128xf32>
    %c0_9 = arith.constant 0 : index
    %c0_10 = arith.constant 0 : index
    %10 = vector.load %arg5[%c0_9, %c0_10] : memref<1x128xf32, #tpu.memory_space<vmem>>, vector<1x128xf32>
    %11 = vector.broadcast %10 : vector<1x128xf32> to vector<8x128xf32>
    %12 = arith.addf %9, %11 : vector<8x128xf32>
    %cst_11 = arith.constant dense<0xFF800000> : vector<8xf32>
    %13 = vector.multi_reduction <maximumf>, %12, %cst_11 [1] : vector<8x128xf32> to vector<8xf32>
    %14 = vector.shape_cast %13 : vector<8xf32> to vector<8x1xf32>
    %15 = vector.broadcast %14 : vector<8x1xf32> to vector<8x128xf32>
    %16 = arith.subf %12, %15 : vector<8x128xf32>
    %17 = math.exp %16 : vector<8x128xf32>
    %cst_12 = arith.constant dense<0.000000e+00> : vector<8xf32>
    %18 = vector.multi_reduction <add>, %17, %cst_12 [1] : vector<8x128xf32> to vector<8xf32>
    %19 = vector.shape_cast %18 : vector<8xf32> to vector<8x1xf32>
    %20 = vector.broadcast %19 : vector<8x1xf32> to vector<8x128xf32>
    %21 = arith.divf %17, %20 : vector<8x128xf32>
    %c0_13 = arith.constant 0 : index
    %c0_14 = arith.constant 0 : index
    %22 = vector.load %arg6[%c0_13, %c0_14] : memref<8x128xf32, #tpu.memory_space<vmem>>, vector<8x128xf32>
    tpu.vector_store %arg6[%c0_13, %c0_14], %21 {strides = array<i32>} : memref<8x128xf32, #tpu.memory_space<vmem>>, vector<8x128xf32>,
    return
  }
  func.func @transform_0(%arg0: i32) -> (i32, i32) {
    %c0_i32 = arith.constant 0 : i32
    %c0_i32_0 = arith.constant 0 : i32
    return %arg0, %c0_i32 : i32, i32
  }
  func.func @transform_1(%arg0: i32) -> (i32, i32) {
    %c0_i32 = arith.constant 0 : i32
    %c0_i32_0 = arith.constant 0 : i32
    %c0_i32_1 = arith.constant 0 : i32
    return %c0_i32, %c0_i32_0 : i32, i32
  }
  func.func @transform_2(%arg0: i32) -> (i32, i32) {
    %c0_i32 = arith.constant 0 : i32
    %c0_i32_0 = arith.constant 0 : i32
    %c0_i32_1 = arith.constant 0 : i32
    return %c0_i32, %c0_i32_0 : i32, i32
  }
  func.func @transform_3(%arg0: i32) -> (i32, i32) {
    %c0_i32 = arith.constant 0 : i32
    %c0_i32_0 = arith.constant 0 : i32
    %c0_i32_1 = arith.constant 0 : i32
    return %c0_i32, %c0_i32_0 : i32, i32
  }
  func.func @transform_4(%arg0: i32) -> (i32, i32) {
    %c0_i32 = arith.constant 0 : i32
    %c0_i32_0 = arith.constant 0 : i32
    %c0_i32_1 = arith.constant 0 : i32
    return %c0_i32, %c0_i32_0 : i32, i32
  }
  func.func @transform_5(%arg0: i32) -> (i32, i32) {
    %c0_i32 = arith.constant 0 : i32
    %c0_i32_0 = arith.constant 0 : i32
    return %arg0, %c0_i32 : i32, i32
  }
}

</mosaic_0001>

<llo_original>
// kernel: softmax_policy_forward.1
$region0: #{softmax_policy_forward.1}
  #allocation0 [shape = 'u32[]', space=smem, size = 0x4, offset = 0x4, fixed_abs, tag = 'smem constant byte address 0x4 - core index']
  #allocation1 [shape = 'u32[144,128]{1,0:T(1,128)}', space=vmem, size = 0x12000, scoped, tag = 'internal scratch']
  %s0 = inlined_call_operand.vmem [shape: f32[8,16], index: 0, kind: input, shape index: {}]
  %s1 = inlined_call_operand.vmem [shape: f32[16,32], index: 1, kind: input, shape index: {}]
  %s2 = inlined_call_operand.vmem [shape: f32[1,32], index: 2, kind: input, shape index: {}]
  %s3 = inlined_call_operand.vmem [shape: f32[32,128], index: 3, kind: input, shape index: {}]
  %s4 = inlined_call_operand.vmem [shape: f32[1,128], index: 4, kind: input, shape index: {}]
  %s5 = inlined_call_operand.hbm [shape: f32[8,128], index: 5, kind: output, shape index: {}]
  %s6 = sld [smem:[#allocation0]]
  $region30: #{softmax_policy_forward.1} parent=0
    _
  %s8 = ssub.s32 1, %s6
  %s9 = scalar_select 0, %s8, %s6
  $region1: #{softmax_policy_forward.1} parent=0
    #allocation2 [shape = 'u8[4096]{0}', space=vmem, size = 0x1000, scoped, tag = 'output window, operand 0, single buffered']
    #allocation3 [shape = 's32[1]{0}', space=sflag, size = 0x4, scoped, tag = 'scoped memory for softmax_policy_forward.1']
    %10 = vsyncpa [#allocation3], 0
    // Predicated region
    $region2: #{softmax_policy_forward.1} parent=1 // pred_check
      _
    $region3: #{softmax_policy_forward.1} parent=1 // pred_check_branch
      %12 = sbr.rel (0) target = $region5
    $region4: #{softmax_policy_forward.1} parent=1 // pred_region
      _
    $region5: #{softmax_policy_forward.1} parent=1 // pred_fallthru
      _
    // Predicated region
    $region6: #{softmax_policy_forward.1} parent=1 // pred_check
      _
    $region7: #{softmax_policy_forward.1} parent=1 // pred_check_branch
      %14 = sbr.rel (0) target = $region9
    $region8: #{softmax_policy_forward.1} parent=1 // pred_region
      _
    $region9: #{softmax_policy_forward.1} parent=1 // pred_fallthru
      _
    // Predicated region
    $region10: #{softmax_policy_forward.1} parent=1 // pred_check
      _
    $region11: #{softmax_policy_forward.1} parent=1 // pred_check_branch
      %16 = sbr.rel (0) target = $region13
    $region12: #{softmax_policy_forward.1} parent=1 // pred_region
      _
    $region13: #{softmax_policy_forward.1} parent=1 // pred_fallthru
      _
    // Predicated region
    $region14: #{softmax_policy_forward.1} parent=1 // pred_check
      _
    $region15: #{softmax_policy_forward.1} parent=1 // pred_check_branch
      %18 = sbr.rel (0) target = $region17
    $region16: #{softmax_policy_forward.1} parent=1 // pred_region
      _
    $region17: #{softmax_policy_forward.1} parent=1 // pred_fallthru
      _
    // Predicated region
    $region18: #{softmax_policy_forward.1} parent=1 // pred_check
      _
    $region19: #{softmax_policy_forward.1} parent=1 // pred_check_branch
      %20 = sbr.rel (0) target = $region21
    $region20: #{softmax_policy_forward.1} parent=1 // pred_region
      _
    $region21: #{softmax_policy_forward.1} parent=1 // pred_fallthru
      _
    %v21 = vld [vmem:[%s0] sm:$0xff]
    %v22 = vld [vmem:[%s1] sm:$0xff]
    %v23 = vld [vmem:[%s1 + $0x8] sm:$0xff]
    %v24 = vld [vmem:[%s2] sm:$0x1]
    %v26 = vlaneseq
    %v27 = vshrl.u32 %v26, 7
    %v28 = vsub.s32 0, %v27
    %v29 = vrot.slane %v24, %v28
    %vm31 = vcmask 130048
    %v33 = vsel %vm31, %v21, 0
    %35 = vmatprep.subr.mxu0 0.0
    %36 = vmatpush1.msra.mxu0 %v22
    %37 = vmatprep.subr.mxu0 0.0
    %38 = vmatpush1.msra.mxu0 %v23
    %39 = vmatprep.subr.mxu0 0.0
    %40 = vmatpush1.msra.mxu0 0.0
    %41 = vmatprep.subr.mxu0 0.0
    %42 = vmatpush1.msra.mxu0 0.0
    %43 = vmatprep.subr.mxu0 0.0
    %44 = vmatpush1.msra.mxu0 0.0
    %45 = vmatprep.subr.mxu0 0.0
    %46 = vmatpush1.msra.mxu0 0.0
    %47 = vmatprep.subr.mxu0 0.0
    %48 = vmatpush1.msra.mxu0 0.0
    %49 = vmatprep.subr.mxu0 0.0
    %50 = vmatpush1.msra.mxu0 0.0
    %51 = vmatprep.subr.mxu0 0.0
    %52 = vmatpush1.msra.mxu0 0.0
    %53 = vmatprep.subr.mxu0 0.0
    %54 = vmatpush1.msra.mxu0 0.0
    %55 = vmatprep.subr.mxu0 0.0
    %56 = vmatpush1.msra.mxu0 0.0
    %57 = vmatprep.subr.mxu0 0.0
    %58 = vmatpush1.msra.mxu0 0.0
    %59 = vmatprep.subr.mxu0 0.0
    %60 = vmatpush1.msra.mxu0 0.0
    %61 = vmatprep.subr.mxu0 0.0
    %62 = vmatpush1.msra.mxu0 0.0
    %63 = vmatprep.subr.mxu0 0.0
    %64 = vmatpush1.msra.mxu0 0.0
    %65 = vmatprep.subr.mxu0 0.0
    %66 = vmatpush1.msra.mxu0 0.0
    %67 = vmatprep.subr.mxu0 0.0
    %68 = vmatpush1.msra.mxu0 0.0
    %69 = vmatprep.subr.mxu0 0.0
    %70 = vmatpush1.msra.mxu0 0.0
    %71 = vmatprep.subr.mxu0 0.0
    %72 = vmatpush1.msra.mxu0 0.0
    %73 = vmatprep.subr.mxu0 0.0
    %74 = vmatpush1.msra.mxu0 0.0
    %75 = vmatprep.subr.mxu0 0.0
    %76 = vmatpush1.msra.mxu0 0.0
    %77 = vmatprep.subr.mxu0 0.0
    %78 = vmatpush1.msra.mxu0 0.0
    %79 = vmatprep.subr.mxu0 0.0
    %80 = vmatpush1.msra.mxu0 0.0
    %81 = vmatprep.subr.mxu0 0.0
    %82 = vmatpush1.msra.mxu0 0.0
    %83 = vmatprep.subr.mxu0 0.0
    %84 = vmatpush1.msra.mxu0 0.0
    %85 = vmatprep.subr.mxu0 0.0
    %86 = vmatpush1.msra.mxu0 0.0
    %87 = vmatprep.subr.mxu0 0.0
    %88 = vmatpush1.msra.mxu0 0.0
    %89 = vmatprep.subr.mxu0 0.0
    %90 = vmatpush1.msra.mxu0 0.0
    %91 = vmatprep.subr.mxu0 0.0
    %92 = vmatpush1.msra.mxu0 0.0
    %93 = vmatprep.subr.mxu0 0.0
    %94 = vmatpush1.msra.mxu0 0.0
    %95 = vmatprep.subr.mxu0 0.0
    %96 = vmatpush1.msra.mxu0 0.0
    %97 = vmatprep.subr.mxu0 0.0
    %98 = vmatpush1.msra.mxu0 0.0
    %99 = vmatprep.mubr.f32.mxu0 0.0
    %100 = vmatmul.mubr.f32.gmra.mrb[0].mxu0 %v33
    %v101 = vpop.f32.mrb[0].mxu0
    %v102 = vadd.f32 %v29, %v101
    %v103 = vpop.f32.mrb[0].mxu0
    %104 = vdwg.mxu0
    %v105 = vmax.f32 %v102, 0.0
    %v106 = vld [vmem:[%s3] sm:$0xff]
    %v107 = vld [vmem:[%s3 + $0x8] sm:$0xff]
    %v108 = vld [vmem:[%s3 + $0x10] sm:$0xff]
    %v109 = vld [vmem:[%s3 + $0x18] sm:$0xff]
    %v110 = vld [vmem:[%s4] sm:$0x1]
    %v112 = vlaneseq
    %v113 = vshrl.u32 %v112, 7
    %v114 = vsub.s32 0, %v113
    %v115 = vrot.slane %v110, %v114
    %vm117 = vcmask 261120
    %v119 = vsel %vm117, %v105, 0
    %121 = vmatprep.subr.mxu0 0.0
    %122 = vmatpush1.msra.mxu0 %v106
    %123 = vmatprep.subr.mxu0 0.0
    %124 = vmatpush1.msra.mxu0 %v107
    %125 = vmatprep.subr.mxu0 0.0
    %126 = vmatpush1.msra.mxu0 %v108
    %127 = vmatprep.subr.mxu0 0.0
    %128 = vmatpush1.msra.mxu0 %v109
    %129 = vmatprep.subr.mxu0 0.0
    %130 = vmatpush1.msra.mxu0 0.0
    %131 = vmatprep.subr.mxu0 0.0
    %132 = vmatpush1.msra.mxu0 0.0
    %133 = vmatprep.subr.mxu0 0.0
    %134 = vmatpush1.msra.mxu0 0.0
    %135 = vmatprep.subr.mxu0 0.0
    %136 = vmatpush1.msra.mxu0 0.0
    %137 = vmatprep.subr.mxu0 0.0
    %138 = vmatpush1.msra.mxu0 0.0
    %139 = vmatprep.subr.mxu0 0.0
    %140 = vmatpush1.msra.mxu0 0.0
    %141 = vmatprep.subr.mxu0 0.0
    %142 = vmatpush1.msra.mxu0 0.0
    %143 = vmatprep.subr.mxu0 0.0
    %144 = vmatpush1.msra.mxu0 0.0
    %145 = vmatprep.subr.mxu0 0.0
    %146 = vmatpush1.msra.mxu0 0.0
    %147 = vmatprep.subr.mxu0 0.0
    %148 = vmatpush1.msra.mxu0 0.0
    %149 = vmatprep.subr.mxu0 0.0
    %150 = vmatpush1.msra.mxu0 0.0
    %151 = vmatprep.subr.mxu0 0.0
    %152 = vmatpush1.msra.mxu0 0.0
    %153 = vmatprep.subr.mxu0 0.0
    %154 = vmatpush1.msra.mxu0 0.0
    %155 = vmatprep.subr.mxu0 0.0
    %156 = vmatpush1.msra.mxu0 0.0
    %157 = vmatprep.subr.mxu0 0.0
    %158 = vmatpush1.msra.mxu0 0.0
    %159 = vmatprep.subr.mxu0 0.0
    %160 = vmatpush1.msra.mxu0 0.0
    %161 = vmatprep.subr.mxu0 0.0
    %162 = vmatpush1.msra.mxu0 0.0
    %163 = vmatprep.subr.mxu0 0.0
    %164 = vmatpush1.msra.mxu0 0.0
    %165 = vmatprep.subr.mxu0 0.0
    %166 = vmatpush1.msra.mxu0 0.0
    %167 = vmatprep.subr.mxu0 0.0
    %168 = vmatpush1.msra.mxu0 0.0
    %169 = vmatprep.subr.mxu0 0.0
    %170 = vmatpush1.msra.mxu0 0.0
    %171 = vmatprep.subr.mxu0 0.0
    %172 = vmatpush1.msra.mxu0 0.0
    %173 = vmatprep.subr.mxu0 0.0
    %174 = vmatpush1.msra.mxu0 0.0
    %175 = vmatprep.subr.mxu0 0.0
    %176 = vmatpush1.msra.mxu0 0.0
    %177 = vmatprep.subr.mxu0 0.0
    %178 = vmatpush1.msra.mxu0 0.0
    %179 = vmatprep.subr.mxu0 0.0
    %180 = vmatpush1.msra.mxu0 0.0
    %181 = vmatprep.subr.mxu0 0.0
    %182 = vmatpush1.msra.mxu0 0.0
    %183 = vmatprep.subr.mxu0 0.0
    %184 = vmatpush1.msra.mxu0 0.0
    %185 = vmatprep.mubr.f32.mxu0 0.0
    %186 = vmatmul.mubr.f32.gmra.mrb[0].mxu0 %v119
    %v187 = vpop.f32.mrb[0].mxu0
    %v188 = vadd.f32 %v115, %v187
    %v189 = vpop.f32.mrb[0].mxu0
    %190 = vdwg.mxu0
    %191 = vmax.xlane.f32.xlu0 %v188
    %v192 = vpop.xlane.xlu0 %191
    %v193 = vsub.f32 %v188, %v192
    %v194 = vmul.f32 %v193, 1.442695
    %v195 = vpow.pop %v194
    %196 = vadd.xlane.f32.xlu0 %v195
    %v197 = vpop.xlane.xlu0 %196
    %v198 = vrcp.pop %v197
    %v199 = vmul.f32 %v195, %v198
    %200 = vst [vmem:[#allocation2] sm:$0xff] %v199
    // Predicated region
    $region22: #{softmax_policy_forward.1} parent=1 // pred_check
      _
    $region23: #{softmax_policy_forward.1} parent=1 // pred_check_branch
      %202 = sbr.rel (0) target = $region25
    $region24: #{softmax_policy_forward.1} parent=1 // pred_region
      %s204 = ssub.s32 128, 128
      %205 = vsyncadd [#allocation3], %s204
      %s207 = sshll.u32 [#allocation2], 4
      %s208 = int_to_ptr.vmem [resolvable:$true] %s207
      %210 = dma.vmem_to_hbm [thread:$0]  %s208, 128, %s5, [#allocation3]
    $region25: #{softmax_policy_forward.1} parent=1 // pred_fallthru
      _
    // Predicated region
    $region26: #{softmax_policy_forward.1} parent=1 // pred_check
      _
    $region27: #{softmax_policy_forward.1} parent=1 // pred_check_branch
      %212 = sbr.rel (0) target = $region29
    $region28: #{softmax_policy_forward.1} parent=1 // pred_region
      %213 = dma.done [#allocation3], 128
    $region29: #{softmax_policy_forward.1} parent=1 // pred_fallthru
      _
    %214 = vsyncpa [#allocation3], 1

</llo_original>
